<compile_context>
chip_gen: v7x
topology: tpu7x:2x2x1
jax: 0.10.0
libtpu: 0.0.40
codegen_flags: <defaults>
</compile_context>

<pallas_src>
import jax
import jax.numpy as jnp
from jax.experimental import pallas as pl
from jax.experimental.pallas import tpu as pltpu


def _pick_tile_n(n_rows: int, n_cls: int, itemsize: int) -> int:
    # ~24 MiB working set: 2x double-buffered input tile + ~4 live f32
    # (TILE_N, C) temporaries.  Fits the scoped-VMEM budget on v5e/v6e/v7x.
    budget = 24 * 1024 * 1024
    per_row = 2 * n_cls * itemsize + 4 * n_cls * 4
    t = max(8, min(1024, (budget // per_row) // 8 * 8))
    if n_rows >= 8:
        t = min(t, (n_rows // 8) * 8)   # multiple of 8 (sublane); last tile may be partial
    else:
        t = n_rows                      # block equals full array dim (allowed)
    return int(t)


def make_cross_entropy_label_smooth(num_classes: int, epsilon: float):
    """Returns loss_fn(inputs, targets) replicating the PyTorch module's forward."""

    def loss_fn(inputs, targets):
        N, C = inputs.shape
        assert C == num_classes
        itemsize = jnp.dtype(inputs.dtype).itemsize
        tile_n = _pick_tile_n(N, C, itemsize)
        num_tiles = pl.cdiv(N, tile_n)

        # Targets as an (N, 1) int32 column so they ride the same row tiling.
        t2 = targets.astype(jnp.int32).reshape(N, 1)

        def kernel(x_ref, t_ref, o_ref):
            i = pl.program_id(0)
            x = x_ref[...].astype(jnp.float32)                      # (tile_n, C)

            # Row-validity mask for the (possibly partial) last tile.
            row_idx = i * tile_n + jax.lax.broadcasted_iota(
                jnp.int32, (tile_n, 1), 0)                          # (tile_n, 1)
            valid = row_idx < N                                     # (tile_n, 1) bool
            # Sanitize padded rows so exp/log stay finite (no NaN poisoning).
            x = jnp.where(valid, x, 0.0)

            # Numerically stable log-softmax pieces (class axis = lanes, full extent).
            m = jnp.max(x, axis=1, keepdims=True)                   # (tile_n, 1)
            shifted = x - m                                         # (tile_n, C)
            lse = jnp.log(jnp.sum(jnp.exp(shifted), axis=1, keepdims=True))

            # sum_c log_probs = sum_c shifted - C * lse
            s_sum = jnp.sum(shifted, axis=1, keepdims=True)
            sum_lp = s_sum - num_classes * lse

            # log_probs at the target class: lane compare + reduce, no full
            # log_probs tensor and no gather.
            cls_idx = jax.lax.broadcasted_iota(jnp.int32, x.shape, 1)
            t_shift = jnp.sum(
                jnp.where(cls_idx == t_ref[...], shifted, 0.0),
                axis=1, keepdims=True)
            tgt_lp = t_shift - lse

            # Per-row smoothed cross-entropy, masked, reduced to one scalar per tile.
            per_row = (-(epsilon / num_classes) * sum_lp
                       - (1.0 - epsilon) * tgt_lp)                  # (tile_n, 1)
            tile_loss = jnp.sum(per_row * valid.astype(jnp.float32))

            # Lane-dense partial-sum output block (unmasked full-vreg store).
            o_ref[...] = jnp.full(o_ref.shape, tile_loss, dtype=jnp.float32)

        cost = pl.CostEstimate(
            flops=6 * N * C,
            transcendentals=N * C,
            bytes_accessed=N * C * itemsize + N * 4 + num_tiles * 8 * 128 * 4,
        )

        partial = pl.pallas_call(
            kernel,
            out_shape=jax.ShapeDtypeStruct((num_tiles, 8, 128), jnp.float32),
            grid=(num_tiles,),
            in_specs=[
                pl.BlockSpec((tile_n, C), lambda i: (i, 0)),
                pl.BlockSpec((tile_n, 1), lambda i: (i, 0)),
            ],
            out_specs=pl.BlockSpec((1, 8, 128), lambda i: (i, 0, 0)),
            compiler_params=pltpu.CompilerParams(
                dimension_semantics=("parallel",),
                vmem_limit_bytes=48 * 1024 * 1024,
            ),
            cost_estimate=cost,
        )(inputs, t2)

        # Tiny final reduction + mean-over-batch normalization in plain JAX.
        return jnp.sum(partial[:, 0, 0]) / N

    return loss_fn


def _reference(inputs, targets, num_classes, epsilon):
    # Pure-JAX reference of the PyTorch forward.
    x = inputs.astype(jnp.float32)
    log_probs = jax.nn.log_softmax(x, axis=1)
    onehot = jax.nn.one_hot(targets, num_classes, dtype=jnp.float32)
    smoothed = (1.0 - epsilon) * onehot + epsilon / num_classes
    return jnp.sum(jnp.mean(-smoothed * log_probs, axis=0))


if __name__ == "__main__":
    NUM_CLASSES = 128   # num_classes from __init__
    EPSILON = 0.1       # epsilon from __init__

    key = jax.random.PRNGKey(0)
    loss_fn = make_cross_entropy_label_smooth(NUM_CLASSES, EPSILON)

    # Case 1: small aligned batch.
    k_x, k_t, key = jax.random.split(key, 3)
    x1 = jax.random.normal(k_x, (8, NUM_CLASSES), dtype=jnp.float32)
    t1 = jax.random.randint(k_t, (8,), 0, NUM_CLASSES, dtype=jnp.int32)
    out1 = jax.block_until_ready(loss_fn(x1, t1))
    ref1 = jax.block_until_ready(_reference(x1, t1, NUM_CLASSES, EPSILON))
    assert jnp.allclose(out1, ref1, rtol=1e-5, atol=1e-5), (out1, ref1)

    # Case 2: ragged batch (exercises the partial-tile row mask).
    k_x, k_t = jax.random.split(key)
    x2 = jax.random.normal(k_x, (20, NUM_CLASSES), dtype=jnp.float32)
    t2 = jax.random.randint(k_t, (20,), 0, NUM_CLASSES, dtype=jnp.int32)
    out2 = jax.block_until_ready(loss_fn(x2, t2))
    ref2 = jax.block_until_ready(_reference(x2, t2, NUM_CLASSES, EPSILON))
    assert jnp.allclose(out2, ref2, rtol=1e-5, atol=1e-5), (out2, ref2)

    print("KERNEL_OK")
</pallas_src>

<mosaic_0001>
module attributes {stable_mosaic.version = 11 : i64} {
  func.func @kernel(%arg0: i32, %arg1: memref<8x128xf32, #tpu.memory_space<vmem>>, %arg2: memref<8x1xi32, #tpu.memory_space<vmem>>, %arg3: memref<1x8x128xf32, #tpu.memory_space<vmem>>) attributes {dimension_semantics = [#tpu.dimension_semantics<parallel>], iteration_bounds = array<i64: 1>, scalar_prefetch = 0 : i64, scratch_operands = 0 : i64, tpu.core_type = #tpu.core_type<tc>, window_params = [{transform_indices = @transform_0, window_bounds = array<i64: 8, 128>}, {transform_indices = @transform_1, window_bounds = array<i64: 8, 1>}, {transform_indices = @transform_2, window_bounds = array<i64: 1, 8, 128>}]} {
    %c0 = arith.constant 0 : index
    %c0_0 = arith.constant 0 : index
    %0 = vector.load %arg1[%c0, %c0_0] : memref<8x128xf32, #tpu.memory_space<vmem>>, vector<8x128xf32>
    %c8_i32 = arith.constant 8 : i32
    %1 = arith.muli %arg0, %c8_i32 : i32
    %2 = tpu.iota {dimensions = array<i32: 0>} : vector<8x1xi32>
    %3 = vector.broadcast %1 : i32 to vector<8x1xi32>
    %4 = arith.addi %3, %2 : vector<8x1xi32>
    %c8_i32_1 = arith.constant 8 : i32
    %5 = vector.broadcast %c8_i32_1 : i32 to vector<8x1xi32>
    %6 = arith.cmpi slt, %4, %5 : vector<8x1xi32>
    %cst = arith.constant 0.000000e+00 : f32
    %7 = vector.shape_cast %6 : vector<8x1xi1> to vector<8x1xi1>
    %8 = vector.broadcast %7 : vector<8x1xi1> to vector<8x128xi1>
    %9 = vector.broadcast %cst : f32 to vector<8x128xf32>
    %10 = arith.select %8, %0, %9 : vector<8x128xi1>, vector<8x128xf32>
    %cst_2 = arith.constant dense<0xFF800000> : vector<8xf32>
    %11 = vector.multi_reduction <maximumf>, %10, %cst_2 [1] : vector<8x128xf32> to vector<8xf32>
    %12 = vector.shape_cast %11 : vector<8xf32> to vector<8x1xf32>
    %13 = vector.broadcast %12 : vector<8x1xf32> to vector<8x128xf32>
    %14 = arith.subf %10, %13 : vector<8x128xf32>
    %15 = math.exp %14 : vector<8x128xf32>
    %cst_3 = arith.constant dense<0.000000e+00> : vector<8xf32>
    %16 = vector.multi_reduction <add>, %15, %cst_3 [1] : vector<8x128xf32> to vector<8xf32>
    %17 = vector.shape_cast %16 : vector<8xf32> to vector<8x1xf32>
    %18 = math.log %17 : vector<8x1xf32>
    %cst_4 = arith.constant dense<0.000000e+00> : vector<8xf32>
    %19 = vector.multi_reduction <add>, %14, %cst_4 [1] : vector<8x128xf32> to vector<8xf32>
    %20 = vector.shape_cast %19 : vector<8xf32> to vector<8x1xf32>
    %cst_5 = arith.constant 1.280000e+02 : f32
    %21 = vector.broadcast %cst_5 : f32 to vector<8x1xf32>
    %22 = arith.mulf %21, %18 : vector<8x1xf32>
    %23 = arith.subf %20, %22 : vector<8x1xf32>
    %24 = tpu.iota {dimensions = array<i32: 1>} : vector<8x128xi32>
    %c0_6 = arith.constant 0 : index
    %c0_7 = arith.constant 0 : index
    %25 = vector.load %arg2[%c0_6, %c0_7] : memref<8x1xi32, #tpu.memory_space<vmem>>, vector<8x1xi32>
    %26 = vector.broadcast %25 : vector<8x1xi32> to vector<8x128xi32>
    %27 = arith.cmpi eq, %24, %26 : vector<8x128xi32>
    %cst_8 = arith.constant 0.000000e+00 : f32
    %28 = vector.broadcast %cst_8 : f32 to vector<8x128xf32>
    %29 = arith.select %27, %14, %28 : vector<8x128xi1>, vector<8x128xf32>
    %cst_9 = arith.constant dense<0.000000e+00> : vector<8xf32>
    %30 = vector.multi_reduction <add>, %29, %cst_9 [1] : vector<8x128xf32> to vector<8xf32>
    %31 = vector.shape_cast %30 : vector<8xf32> to vector<8x1xf32>
    %32 = arith.subf %31, %18 : vector<8x1xf32>
    %cst_10 = arith.constant -7.812500e-04 : f32
    %33 = vector.broadcast %cst_10 : f32 to vector<8x1xf32>
    %34 = arith.mulf %33, %23 : vector<8x1xf32>
    %cst_11 = arith.constant 0.899999976 : f32
    %35 = vector.broadcast %cst_11 : f32 to vector<8x1xf32>
    %36 = arith.mulf %35, %32 : vector<8x1xf32>
    %37 = arith.subf %34, %36 : vector<8x1xf32>
    %38 = arith.extui %6 : vector<8x1xi1> to vector<8x1xi32>
    %39 = arith.sitofp %38 : vector<8x1xi32> to vector<8x1xf32>
    %40 = arith.mulf %37, %39 : vector<8x1xf32>
    %41 = vector.shape_cast %40 : vector<8x1xf32> to vector<1x8x1xf32>
    %cst_12 = arith.constant dense<0.000000e+00> : vector<1xf32>
    %42 = vector.multi_reduction <add>, %41, %cst_12 [1, 2] : vector<1x8x1xf32> to vector<1xf32>
    %43 = vector.shape_cast %42 : vector<1xf32> to vector<1x1x1xf32>
    %44 = vector.extract %43[0, 0, 0] : f32 from vector<1x1x1xf32>
    %45 = vector.broadcast %44 : f32 to vector<1x8x128xf32>
    %c0_13 = arith.constant 0 : index
    %c0_14 = arith.constant 0 : index
    %c0_15 = arith.constant 0 : index
    %46 = vector.load %arg3[%c0_13, %c0_14, %c0_15] : memref<1x8x128xf32, #tpu.memory_space<vmem>>, vector<1x8x128xf32>
    tpu.vector_store %arg3[%c0_13, %c0_14, %c0_15], %45 {strides = array<i32>} : memref<1x8x128xf32, #tpu.memory_space<vmem>>, vector<1x8x128xf32>,
    return
  }
  func.func @transform_0(%arg0: i32) -> (i32, i32) {
    %c0_i32 = arith.constant 0 : i32
    %c0_i32_0 = arith.constant 0 : i32
    return %arg0, %c0_i32 : i32, i32
  }
  func.func @transform_1(%arg0: i32) -> (i32, i32) {
    %c0_i32 = arith.constant 0 : i32
    %c0_i32_0 = arith.constant 0 : i32
    return %arg0, %c0_i32 : i32, i32
  }
  func.func @transform_2(%arg0: i32) -> (i32, i32, i32) {
    %c0_i32 = arith.constant 0 : i32
    %c0_i32_0 = arith.constant 0 : i32
    %c0_i32_1 = arith.constant 0 : i32
    return %arg0, %c0_i32, %c0_i32_0 : i32, i32, i32
  }
}

</mosaic_0001>

<llo_original>
// kernel: tpu_custom_call.1
$region0: #{tpu_custom_call.1}
  #allocation0 [shape = 'u32[]', space=smem, size = 0x4, offset = 0x4, fixed_abs, tag = 'smem constant byte address 0x4 - core index']
  #allocation1 [shape = 'u32[144,128]{1,0:T(1,128)}', space=vmem, size = 0x12000, scoped, tag = 'internal scratch']
  %s0 = inlined_call_operand.vmem [shape: f32[8,128], index: 0, kind: input, shape index: {}]
  %s1 = inlined_call_operand.vmem [shape: s32[8,1], index: 1, kind: input, shape index: {}]
  %s2 = inlined_call_operand.hbm [shape: f32[1,8,128], index: 2, kind: output, shape index: {}]
  %s3 = sld [smem:[#allocation0]]
  $region18: #{tpu_custom_call.1} parent=0
    _
  %s5 = ssub.s32 1, %s3
  %s6 = scalar_select 0, %s5, %s3
  $region1: #{tpu_custom_call.1} parent=0
    #allocation2 [shape = 'u8[4096]{0}', space=vmem, size = 0x1000, scoped, tag = 'output window, operand 0, single buffered']
    #allocation3 [shape = 's32[1]{0}', space=sflag, size = 0x4, scoped, tag = 'scoped memory for tpu_custom_call.1']
    %7 = vsyncpa [#allocation3], 0
    // Predicated region
    $region2: #{tpu_custom_call.1} parent=1 // pred_check
      _
    $region3: #{tpu_custom_call.1} parent=1 // pred_check_branch
      %9 = sbr.rel (0) target = $region5
    $region4: #{tpu_custom_call.1} parent=1 // pred_region
      _
    $region5: #{tpu_custom_call.1} parent=1 // pred_fallthru
      _
    // Predicated region
    $region6: #{tpu_custom_call.1} parent=1 // pred_check
      _
    $region7: #{tpu_custom_call.1} parent=1 // pred_check_branch
      %11 = sbr.rel (0) target = $region9
    $region8: #{tpu_custom_call.1} parent=1 // pred_region
      _
    $region9: #{tpu_custom_call.1} parent=1 // pred_fallthru
      _
    %v12 = vld [vmem:[%s0] sm:$0xff]
    %s13 = smul.u32 0, 8
    %v14 = vlaneseq
    %v15 = vshrl.u32 %v14, 7
    %v16 = vstv %s13
    %v17 = vadd.s32 %v16, %v15
    %vm18 = vcmp.lt.s32.totalorder %v17, 8
    %v19 = vsel %vm18, 1, 0
    %vm20 = vcmp.eq.s32.totalorder %v19, 1
    %v21 = vsel %vm20, %v12, 0.0
    %22 = vmax.xlane.f32.xlu0 %v21
    %v23 = vpop.xlane.xlu0 %22
    %v24 = vsub.f32 %v21, %v23
    %v25 = vmul.f32 %v24, 1.442695
    %v26 = vpow.pop %v25
    %27 = vadd.xlane.f32.xlu0 %v26
    %v28 = vpop.xlane.xlu0 %27
    %v29 = vlog2.pop %v28
    %v30 = vmul.f32 %v29, 0.6931472
    %31 = vadd.xlane.f32.xlu0 %v24
    %v32 = vpop.xlane.xlu0 %31
    %v33 = vmul.f32 %v30, 128.0
    %v34 = vsub.f32 %v32, %v33
    %v35 = vlaneseq
    %v36 = vand.u32 %v35, 127
    %v37 = vld [vmem:[%s1] sm:$0xff]
    %38 = vset.pattern.permute.xlu0 0
    %39 = vperm.xlu0 %38, %v37
    %v40 = vpop.permute.xlu0 %39
    %vm41 = vcmp.eq.s32.totalorder %v36, %v40
    %v42 = vsel %vm41, %v24, 0.0
    %43 = vadd.xlane.f32.xlu0 %v42
    %v44 = vpop.xlane.xlu0 %43
    %v45 = vsub.f32 %v44, %v30
    %v46 = vmul.f32 %v34, -0.00078125
    %v47 = vmul.f32 %v45, 0.9
    %v48 = vsub.f32 %v46, %v47
    %v49 = vcvt.s32.f32 %v19
    %v50 = vmul.f32 %v48, %v49
    %vm51 = vcmask 7168
    %v52 = vsel %vm51, %v50, 0.0
    %53 = vadd.xlane.f32.xlu0 %v52
    %v54 = vpop.xlane.xlu0 %53
    %v55 = vrot.slane %v54, 4
    %v56 = vadd.f32 %v54, %v55
    %v57 = vrot.slane %v56, 2
    %v58 = vadd.f32 %v56, %v57
    %v59 = vrot.slane %v58, 1
    %v60 = vadd.f32 %v58, %v59
    %s61 = vtos %v60
    %v62 = vstv %s61
    %63 = vst [vmem:[#allocation2] sm:$0xff] %v62
    // Predicated region
    $region10: #{tpu_custom_call.1} parent=1 // pred_check
      _
    $region11: #{tpu_custom_call.1} parent=1 // pred_check_branch
      %65 = sbr.rel (0) target = $region13
    $region12: #{tpu_custom_call.1} parent=1 // pred_region
      %s67 = ssub.s32 128, 128
      %68 = vsyncadd [#allocation3], %s67
      %s70 = sshll.u32 [#allocation2], 4
      %s71 = int_to_ptr.vmem [resolvable:$true] %s70
      %73 = dma.vmem_to_hbm [thread:$0]  %s71, 128, %s2, [#allocation3]
    $region13: #{tpu_custom_call.1} parent=1 // pred_fallthru
      _
    // Predicated region
    $region14: #{tpu_custom_call.1} parent=1 // pred_check
      _
    $region15: #{tpu_custom_call.1} parent=1 // pred_check_branch
      %75 = sbr.rel (0) target = $region17
    $region16: #{tpu_custom_call.1} parent=1 // pred_region
      %76 = dma.done [#allocation3], 128
    $region17: #{tpu_custom_call.1} parent=1 // pred_fallthru
      _
    %77 = vsyncpa [#allocation3], 1

</llo_original>
